<compile_context>
chip_gen: v7x
topology: tpu7x:2x2x1
jax: 0.10.0
libtpu: 0.0.40
codegen_flags: <defaults>
</compile_context>

<pallas_src>
import functools

import jax
import jax.numpy as jnp
from jax.experimental import pallas as pl
from jax.experimental.pallas import tpu as pltpu

EPS = 1e-5              # BatchNorm eps (module default)
_FUSED_N_MAX = 2048     # fuse conv+ReLU+BN into one kernel when B*H_out*W_out fits


# ----------------------------- small helpers --------------------------------

def _round_up(x, m):
    return (x + m - 1) // m * m


def _pad2(x, shape):
    return jnp.pad(x, ((0, shape[0] - x.shape[0]), (0, shape[1] - x.shape[1])))


def _pick_tile(dim, candidates, prefer_multi=False):
    """Largest candidate dividing `dim`; with prefer_multi, prefer >=2 grid steps."""
    first = None
    for t in candidates:
        if dim % t == 0:
            if first is None:
                first = t
            if not prefer_multi or dim // t >= 2:
                return t
    return first if first is not None else dim


def _pick_c_tile(c_pad, n_pad, n_arrays, budget):
    """Channel tile for the ReLU/BN kernel: as large as the VMEM budget allows
    (32-128 instead of the old fixed 8), multiple of 16 (bf16-safe sublanes),
    keeping >=2 grid steps when possible so v7x's second core gets work."""
    cands = [t for t in (128, 64, 32, 16) if c_pad % t == 0]
    if not cands:
        return c_pad
    for t in cands:
        fits = (2 * n_arrays + 1) * t * n_pad * 4 <= budget
        if fits and (c_pad // t >= 2 or c_pad // cands[-1] < 2):
            return t
    return cands[-1]


@functools.lru_cache(maxsize=None)
def _vmem_limit_bytes():
    """Scoped-VMEM limit: ~half the physical capacity (32 MiB on v7x's 64 MiB,
    64 MiB on v5e/v6e's 128 MiB); conservative fallback if the query fails."""
    try:
        cap = int(pltpu.get_tpu_info().vmem_capacity_bytes)
    except Exception:
        return 32 * 1024 * 1024
    return int(min(max(cap // 2, 32 * 1024 * 1024), 96 * 1024 * 1024))


# ----------------------------- ReLU + BatchNorm math --------------------------

def _relu_bn_math(x, scale, shift, *, eps, n_real):
    """ReLU then per-channel BatchNorm on a (rows, N_pad) block.

    Matches the PyTorch module: per-channel mean over (batch, spatial) and
    torch.var's default *unbiased* variance (divisor N-1).  Padded lanes
    (columns >= n_real) of a conv output are exactly zero by construction
    (zero-padded im2col columns x weights), so only the variance term needs a
    mask (ReLU(0)=0 contributes nothing to the mean sum).
    """
    r = jnp.maximum(x.astype(jnp.float32), 0.0)
    n_pad = r.shape[-1]
    inv_n = 1.0 / n_real
    inv_nm1 = 1.0 / max(n_real - 1, 1)
    mean = jnp.sum(r, axis=-1, keepdims=True) * inv_n
    diff = r - mean
    if n_pad != n_real:
        lane = jax.lax.broadcasted_iota(jnp.int32, r.shape, r.ndim - 1)
        dm = jnp.where(lane < n_real, diff, 0.0)
    else:
        dm = diff
    var = jnp.sum(dm * dm, axis=-1, keepdims=True) * inv_nm1
    return shift + scale * (diff * jax.lax.rsqrt(var + eps))


# ----------------------------- Pallas kernels --------------------------------

def _matmul_kernel(wt_ref, at_ref, o_ref, acc_ref):
    """Tiled (C_out, K) @ (K, B*L) matmul; K is the last ("arbitrary") grid axis."""
    @pl.when(pl.program_id(2) == 0)
    def _():
        acc_ref[...] = jnp.zeros_like(acc_ref)

    acc_ref[...] += jnp.dot(wt_ref[...], at_ref[...],
                            preferred_element_type=jnp.float32)

    @pl.when(pl.program_id(2) == pl.num_programs(2) - 1)
    def _():
        o_ref[...] = acc_ref[...].astype(o_ref.dtype)


def _conv_relu_bn_kernel(wt_ref, at_ref, scale_ref, shift_ref, o_ref, acc_ref,
                         *, eps, n_real):
    """Fused conv-matmul + ReLU + BatchNorm.  grid=(M/tm, K/tk); the full N is
    resident, so BN statistics are computed on the f32 accumulator at the last
    K step and only the normalized result ever touches HBM."""
    kk = pl.program_id(1)

    @pl.when(kk == 0)
    def _():
        acc_ref[...] = jnp.zeros_like(acc_ref)

    acc_ref[...] += jnp.dot(wt_ref[...], at_ref[...],
                            preferred_element_type=jnp.float32)

    @pl.when(kk == pl.num_programs(1) - 1)
    def _():
        o_ref[...] = _relu_bn_math(acc_ref[...], scale_ref[...], shift_ref[...],
                                   eps=eps, n_real=n_real).astype(o_ref.dtype)


def _conv_relu_bn_skip_kernel(wt_ref, at_ref, skip_ref, scale_ref, shift_ref,
                              o_ref, acc_ref, *, eps, n_real):
    """Same as above plus the fused residual add and the final ReLU."""
    kk = pl.program_id(1)

    @pl.when(kk == 0)
    def _():
        acc_ref[...] = jnp.zeros_like(acc_ref)

    acc_ref[...] += jnp.dot(wt_ref[...], at_ref[...],
                            preferred_element_type=jnp.float32)

    @pl.when(kk == pl.num_programs(1) - 1)
    def _():
        bn = _relu_bn_math(acc_ref[...], scale_ref[...], shift_ref[...],
                           eps=eps, n_real=n_real)
        o_ref[...] = jnp.maximum(bn + skip_ref[...].astype(jnp.float32),
                                 0.0).astype(o_ref.dtype)


def _relu_bn_kernel(x_ref, scale_ref, shift_ref, o_ref, *, eps, n_real):
    o_ref[...] = _relu_bn_math(x_ref[...], scale_ref[...], shift_ref[...],
                               eps=eps, n_real=n_real).astype(o_ref.dtype)


def _relu_bn_skip_kernel(x_ref, skip_ref, scale_ref, shift_ref, o_ref, *,
                         eps, n_real):
    bn = _relu_bn_math(x_ref[...], scale_ref[...], shift_ref[...],
                       eps=eps, n_real=n_real)
    o_ref[...] = jnp.maximum(bn + skip_ref[...].astype(jnp.float32),
                             0.0).astype(o_ref.dtype)


# ----------------------------- kernel wrappers --------------------------------

def conv_matmul(wt_pad, a_pad, *, out_dtype=jnp.float32):
    """General tiled matmul: wt_pad (M_pad, K_pad) bf16, a_pad (K_pad, N_pad) bf16."""
    m_pad, k_pad = wt_pad.shape
    k_pad2, n_pad = a_pad.shape
    assert k_pad == k_pad2
    tm = _pick_tile(m_pad, (256, 128, 64, 32, 16))        # 256: v6e/v7x MXU rows
    tk = _pick_tile(k_pad, (512, 256, 128))
    tn = _pick_tile(n_pad, (2048, 1024, 512, 256, 128))
    if m_pad // tm == 1 and n_pad // tn == 1:
        # Keep >=2 steps on a "parallel" axis so the v7x second core gets work.
        tn2 = _pick_tile(n_pad, (1024, 512, 256, 128), prefer_multi=True)
        if n_pad // tn2 >= 2:
            tn = tn2
    k_steps = k_pad // tk
    grid = (m_pad // tm, n_pad // tn, k_steps)

    at_map = lambda i, j, kk: (kk, j)
    if k_steps >= 4:
        # Deep-K layers: triple-buffer the biggest per-step DMA (the activation).
        at_spec = pl.BlockSpec((tk, tn), at_map, pipeline_mode=pl.Buffered(3))
    else:
        at_spec = pl.BlockSpec((tk, tn), at_map)

    cost = pl.CostEstimate(
        flops=2 * m_pad * n_pad * k_pad,
        transcendentals=0,
        bytes_accessed=int(m_pad * k_pad * 2 + k_pad * n_pad * 2
                           + m_pad * n_pad * jnp.dtype(out_dtype).itemsize))

    return pl.pallas_call(
        _matmul_kernel,
        out_shape=jax.ShapeDtypeStruct((m_pad, n_pad), out_dtype),
        grid_spec=pltpu.PrefetchScalarGridSpec(
            num_scalar_prefetch=0,
            grid=grid,
            in_specs=[pl.BlockSpec((tm, tk), lambda i, j, kk: (i, kk)), at_spec],
            out_specs=pl.BlockSpec((tm, tn), lambda i, j, kk: (i, j)),
            scratch_shapes=[pltpu.VMEM((tm, tn), jnp.float32)]),
        compiler_params=pltpu.CompilerParams(
            dimension_semantics=("parallel", "parallel", "arbitrary"),
            vmem_limit_bytes=_vmem_limit_bytes()),
        cost_estimate=cost,
    )(wt_pad, a_pad)


def pallas_relu_bn(y_pad, scale_p, shift_p, n_real, *, skip_pad=None,
                   out_dtype=jnp.bfloat16, eps=EPS):
    """Channel-tiled ReLU + BatchNorm on a padded (C_pad, N_pad) conv output;
    optionally fuses the residual add + final ReLU.  Used on the general path."""
    c_pad, n_pad = y_pad.shape
    n_arrays = 4 if skip_pad is not None else 3
    c_tile = _pick_c_tile(c_pad, n_pad, n_arrays, int(_vmem_limit_bytes() * 0.75))

    x_spec = pl.BlockSpec((c_tile, n_pad), lambda i: (i, 0))
    s_spec = pl.BlockSpec((c_tile, 1), lambda i: (i, 0))

    if skip_pad is None:
        kern = functools.partial(_relu_bn_kernel, eps=float(eps), n_real=int(n_real))
        in_specs = [x_spec, s_spec, s_spec]
        args = (y_pad, scale_p, shift_p)
    else:
        assert skip_pad.shape == y_pad.shape
        kern = functools.partial(_relu_bn_skip_kernel, eps=float(eps),
                                 n_real=int(n_real))
        in_specs = [x_spec, x_spec, s_spec, s_spec]
        args = (y_pad, skip_pad, scale_p, shift_p)

    return pl.pallas_call(
        kern,
        out_shape=jax.ShapeDtypeStruct((c_pad, n_pad), out_dtype),
        grid_spec=pltpu.PrefetchScalarGridSpec(
            num_scalar_prefetch=0,
            grid=(c_pad // c_tile,),
            in_specs=in_specs,
            out_specs=x_spec),
        compiler_params=pltpu.CompilerParams(
            dimension_semantics=("parallel",),
            vmem_limit_bytes=_vmem_limit_bytes()),
    )(*args)


def _fused_conv_relu_bn(wt_pad, a_pad, scale_p, shift_p, *, n_real, skip_pad,
                        out_dtype, eps):
    m_pad, k_pad = wt_pad.shape
    _, n_pad = a_pad.shape
    tm = _pick_tile(m_pad, (128, 64, 32, 16), prefer_multi=True)
    tk = _pick_tile(k_pad, (256, 128))
    grid = (m_pad // tm, k_pad // tk)

    wt_spec = pl.BlockSpec((tm, tk), lambda i, kk: (i, kk))
    at_spec = pl.BlockSpec((tk, n_pad), lambda i, kk: (kk, 0))
    s_spec = pl.BlockSpec((tm, 1), lambda i, kk: (i, 0))
    o_spec = pl.BlockSpec((tm, n_pad), lambda i, kk: (i, 0))

    if skip_pad is None:
        kern = functools.partial(_conv_relu_bn_kernel, eps=float(eps),
                                 n_real=int(n_real))
        in_specs = [wt_spec, at_spec, s_spec, s_spec]
        args = (wt_pad, a_pad, scale_p, shift_p)
        skip_bytes = 0
    else:
        assert skip_pad.shape == (m_pad, n_pad), (skip_pad.shape, m_pad, n_pad)
        kern = functools.partial(_conv_relu_bn_skip_kernel, eps=float(eps),
                                 n_real=int(n_real))
        in_specs = [wt_spec, at_spec, o_spec, s_spec, s_spec]
        args = (wt_pad, a_pad, skip_pad, scale_p, shift_p)
        skip_bytes = m_pad * n_pad * skip_pad.dtype.itemsize

    cost = pl.CostEstimate(
        flops=2 * m_pad * n_pad * k_pad,
        transcendentals=m_pad,
        bytes_accessed=int(m_pad * k_pad * 2 + k_pad * n_pad * 2 + skip_bytes
                           + m_pad * n_pad * jnp.dtype(out_dtype).itemsize))

    return pl.pallas_call(
        kern,
        out_shape=jax.ShapeDtypeStruct((m_pad, n_pad), out_dtype),
        grid_spec=pltpu.PrefetchScalarGridSpec(
            num_scalar_prefetch=0,
            grid=grid,
            in_specs=in_specs,
            out_specs=o_spec,
            scratch_shapes=[pltpu.VMEM((tm, n_pad), jnp.float32)]),
        compiler_params=pltpu.CompilerParams(
            dimension_semantics=("parallel", "arbitrary"),
            vmem_limit_bytes=_vmem_limit_bytes()),
        cost_estimate=cost,
    )(*args)


def conv_relu_bn(wt_pad, a, scale_p, shift_p, *, n_real, skip_pad=None,
                 out_dtype=jnp.bfloat16, eps=EPS, force_general=False):
    """conv (im2col matmul) -> ReLU -> BatchNorm, optionally fused with the
    residual add + final ReLU.  `wt_pad` is the pre-padded bf16 (M_pad, K_pad)
    weight, `a` the bf16 (K, N) im2col activations (lane-dense on N)."""
    m_pad, k_pad = wt_pad.shape
    k_dim, n = a.shape
    assert k_dim <= k_pad
    n_pad = _round_up(n, 128)
    a_pad = _pad2(a, (k_pad, n_pad))

    if (not force_general) and n_pad <= _FUSED_N_MAX:
        return _fused_conv_relu_bn(wt_pad, a_pad, scale_p, shift_p,
                                   n_real=n_real, skip_pad=skip_pad,
                                   out_dtype=out_dtype, eps=eps)

    # General path (large N): tiled matmul, then channel-tiled ReLU/BN.
    y = conv_matmul(wt_pad, a_pad, out_dtype=jnp.float32)
    return pallas_relu_bn(y, scale_p, shift_p, n_real, skip_pad=skip_pad,
                          out_dtype=out_dtype, eps=eps)


# ----------------------------- glue: im2col ----------------------------------

def im2col_cbhw(x_cbhw, k, stride):
    """F.unfold equivalent on a channel-major (C, B, H, W) tensor.
    Returns ((C*k*k, B*H_out*W_out), h_out, w_out).  Row order is (c, kh, kw)
    like torch.nn.functional.unfold; column order is (b, oh, ow)."""
    c, b, h, w = x_cbhw.shape
    pad = (k - 1) // 2
    h_out = (h - k + 2 * pad) // stride + 1
    w_out = (w - k + 2 * pad) // stride + 1
    xp = jnp.pad(x_cbhw, ((0, 0), (0, 0), (pad, pad), (pad, pad)))
    patches = [xp[:, :, kh:kh + stride * h_out:stride, kw:kw + stride * w_out:stride]
               for kh in range(k) for kw in range(k)]
    p = jnp.stack(patches, axis=1)                      # (C, k*k, B, H_out, W_out)
    return p.reshape(c * k * k, b * h_out * w_out), h_out, w_out
    # TODO(synk): the k*k im2col expansion is still materialized by XLA in HBM
    # (now in bf16, i.e. half the bytes of the previous revision); fully fusing
    # it into the conv matmul needs either a (kh,kw) grid axis whose index_map
    # selects the shifted/strided row band, or memory_space=pl.ANY activations
    # gathered per tile with pltpu.make_async_copy inside the kernel.


# ----------------------------- parameters ------------------------------------

def init_resblock_params(key, ch_in, ch_out, downsample):
    ks = jax.random.split(key, 7)
    params = {
        "w1": jax.random.normal(ks[0], (ch_in * 3 * 3, ch_out), jnp.float32),
        "w2": jax.random.normal(ks[1], (ch_out * 3 * 3, ch_out), jnp.float32),
        # Module default init is scales=1 / shifts=0; perturb slightly so the
        # affine part of BatchNorm is actually exercised by the check.
        "bn1_scale": 1.0 + 0.1 * jax.random.normal(ks[2], (ch_out,), jnp.float32),
        "bn1_shift": 0.1 * jax.random.normal(ks[3], (ch_out,), jnp.float32),
        "bn2_scale": 1.0 + 0.1 * jax.random.normal(ks[4], (ch_out,), jnp.float32),
        "bn2_shift": 0.1 * jax.random.normal(ks[5], (ch_out,), jnp.float32),
    }
    if downsample:
        params["w_skip"] = jax.random.normal(ks[6], (ch_in * 1 * 1, ch_out),
                                             jnp.float32)
    return params


def _prepare_weight(w_raw):
    """(C_in*k*k, C_out) reference layout -> pre-transposed, pre-padded bf16
    (C_out_pad, K_pad) MXU operand (done once at init, not per forward)."""
    k_dim, c_out = w_raw.shape
    m_pad = _round_up(c_out, 16)
    k_pad = _round_up(k_dim, 128)
    return _pad2(w_raw.T, (m_pad, k_pad)).astype(jnp.bfloat16)


def prepare_resblock_params(params):
    """Add pre-transposed/padded/bf16 weights and padded (C_pad,1) BN params."""
    c_out = params["bn1_scale"].shape[0]
    m_pad = _round_up(c_out, 16)
    prepped = dict(params)
    prepped["w1p"] = _prepare_weight(params["w1"])
    prepped["w2p"] = _prepare_weight(params["w2"])
    if "w_skip" in params:
        prepped["w_skip_p"] = _prepare_weight(params["w_skip"])
    for name in ("bn1_scale", "bn1_shift", "bn2_scale", "bn2_shift"):
        prepped[name + "_p"] = jnp.pad(
            params[name].astype(jnp.float32), (0, m_pad - c_out)).reshape(m_pad, 1)
    return prepped


# ----------------------------- ResBlock forward -------------------------------

@functools.partial(jax.jit, static_argnames=("downsample", "force_general"))
def resblock_forward(params, x, downsample=False, force_general=False):
    b, c_in, h, w = x.shape
    c_out = params["bn1_scale"].shape[0]
    m_pad = params["w1p"].shape[0]
    stride = 2 if downsample else 1

    # Single layout change at entry: NCHW -> channel-major (C, B, H, W), bf16.
    x_cbhw = jnp.transpose(x, (1, 0, 2, 3)).astype(jnp.bfloat16)

    # ---- conv1 -> ReLU -> BN1 (fused; bf16 lane-dense (C, B*L) output) ----
    a1, h1, w1 = im2col_cbhw(x_cbhw, 3, stride)
    n1 = b * h1 * w1
    y1 = conv_relu_bn(params["w1p"], a1, params["bn1_scale_p"],
                      params["bn1_shift_p"], n_real=n1,
                      out_dtype=jnp.bfloat16, force_general=force_general)

    # ---- conv2 -> ReLU -> BN2 -> (+ skip) -> ReLU (fused) ----
    h1_cbhw = y1[:c_out, :n1].reshape(c_out, b, h1, w1)
    a2, h2, w2 = im2col_cbhw(h1_cbhw, 3, 1)
    n2 = b * h2 * w2
    n2_pad = _round_up(n2, 128)

    if downsample:
        a_skip, _, _ = im2col_cbhw(x_cbhw, 1, 2)            # 1x1 stride-2 "unfold"
        a_skip_pad = _pad2(a_skip, (params["w_skip_p"].shape[1], n2_pad))
        skip = conv_matmul(params["w_skip_p"], a_skip_pad, out_dtype=jnp.bfloat16)
    else:
        # Identity skip, kept in bf16.  The small channel pad is a bf16 copy
        # XLA fuses with the entry transpose; avoiding it entirely would need
        # an unpadded ragged BlockSpec on the skip input.
        skip = _pad2(x_cbhw.reshape(c_in, b * h * w), (m_pad, n2_pad))

    out = conv_relu_bn(params["w2p"], a2, params["bn2_scale_p"],
                       params["bn2_shift_p"], n_real=n2, skip_pad=skip,
                       out_dtype=jnp.float32, force_general=force_general)
    out = out[:c_out, :n2].reshape(c_out, b, h2, w2)
    return jnp.transpose(out, (1, 0, 2, 3)).astype(x.dtype)  # back to NCHW
    # TODO(synk): running_mean / running_var buffer updates are training-state
    # side effects that do not change the forward output; not materialized here.


# ----------------------------- pure-JAX reference ------------------------------

@functools.partial(jax.jit, static_argnames=("downsample",))
def resblock_reference(params, x, downsample=False):
    """Pure-XLA reference (no Pallas) with matching bf16 matmul-input precision."""
    def conv(xc, w_raw, k, stride):
        a, ho, wo = im2col_cbhw(xc.astype(jnp.bfloat16), k, stride)
        out = jnp.dot(w_raw.T.astype(jnp.bfloat16), a,
                      preferred_element_type=jnp.float32)
        return out, ho, wo

    def relu_bn(v, scale, shift):
        r = jnp.maximum(v, 0.0)
        n = v.shape[1]
        mean = jnp.mean(r, axis=1, keepdims=True)
        diff = r - mean
        var = jnp.sum(diff * diff, axis=1, keepdims=True) / max(n - 1, 1)
        return shift[:, None] + scale[:, None] * (diff * jax.lax.rsqrt(var + EPS))

    b, c_in, h, w = x.shape
    c_out = params["bn1_scale"].shape[0]
    stride = 2 if downsample else 1
    xc = jnp.transpose(x, (1, 0, 2, 3))
    y1, h1, w1 = conv(xc, params["w1"], 3, stride)
    y1 = relu_bn(y1, params["bn1_scale"], params["bn1_shift"])
    y2, h2, w2 = conv(y1.reshape(c_out, b, h1, w1), params["w2"], 3, 1)
    if downsample:
        skip, _, _ = conv(xc, params["w_skip"], 1, 2)
    else:
        skip = xc.reshape(c_in, b * h * w)
    out = jnp.maximum(relu_bn(y2, params["bn2_scale"], params["bn2_shift"]) + skip,
                      0.0)
    return jnp.transpose(out.reshape(c_out, b, h2, w2), (1, 0, 2, 3))


# ----------------------------- main --------------------------------------------

if __name__ == "__main__":
    key = jax.random.PRNGKey(0)
    kx, kp1, kp2 = jax.random.split(key, 3)

    B, C, H, W = 2, 4, 16, 16
    x = jax.random.normal(kx, (B, C, H, W), jnp.float32)

    # Case 1: no downsample (identity skip), fused path.
    params1 = prepare_resblock_params(init_resblock_params(kp1, C, C, False))
    out1 = jax.block_until_ready(resblock_forward(params1, x, downsample=False))
    ref1 = jax.block_until_ready(resblock_reference(params1, x, downsample=False))
    assert out1.shape == (B, C, H, W), out1.shape
    assert bool(jnp.all(jnp.isfinite(out1)))
    assert bool(jnp.allclose(out1, ref1, rtol=2e-2, atol=2e-2)), \
        float(jnp.max(jnp.abs(out1 - ref1)))

    # Case 2: downsample (stride-2 convs + 1x1 stride-2 skip conv), fused path.
    C_OUT = 8
    params2 = prepare_resblock_params(init_resblock_params(kp2, C, C_OUT, True))
    out2 = jax.block_until_ready(resblock_forward(params2, x, downsample=True))
    ref2 = jax.block_until_ready(resblock_reference(params2, x, downsample=True))
    assert out2.shape == (B, C_OUT, H // 2, W // 2), out2.shape
    assert bool(jnp.all(jnp.isfinite(out2)))
    assert bool(jnp.allclose(out2, ref2, rtol=2e-2, atol=2e-2)), \
        float(jnp.max(jnp.abs(out2 - ref2)))

    # Cases 3/4: exercise the general (tiled matmul + channel-tiled ReLU/BN)
    # path used for shapes too large for the single-strip fused kernel.
    out3 = jax.block_until_ready(
        resblock_forward(params1, x, downsample=False, force_general=True))
    assert bool(jnp.all(jnp.isfinite(out3)))
    assert bool(jnp.allclose(out3, ref1, rtol=2e-2, atol=2e-2)), \
        float(jnp.max(jnp.abs(out3 - ref1)))
    out4 = jax.block_until_ready(
        resblock_forward(params2, x, downsample=True, force_general=True))
    assert bool(jnp.all(jnp.isfinite(out4)))
    assert bool(jnp.allclose(out4, ref2, rtol=2e-2, atol=2e-2)), \
        float(jnp.max(jnp.abs(out4 - ref2)))

    print("KERNEL_OK")
</pallas_src>

<mosaic_0001>
module attributes {stable_mosaic.version = 11 : i64} {
  func.func @_conv_relu_bn_kernel(%arg0: i32, %arg1: i32, %arg2: memref<16x128xbf16, #tpu.memory_space<vmem>>, %arg3: memref<128x512xbf16, #tpu.memory_space<vmem>>, %arg4: memref<16x1xf32, #tpu.memory_space<vmem>>, %arg5: memref<16x1xf32, #tpu.memory_space<vmem>>, %arg6: memref<16x512xbf16, #tpu.memory_space<vmem>>, %arg7: memref<16x512xf32, #tpu.memory_space<vmem>>) attributes {dimension_semantics = [#tpu.dimension_semantics<parallel>, #tpu.dimension_semantics<arbitrary>], iteration_bounds = array<i64: 1, 1>, scalar_prefetch = 0 : i64, scratch_operands = 1 : i64, tpu.core_type = #tpu.core_type<tc>, window_params = [{transform_indices = @transform_0, window_bounds = array<i64: 16, 128>}, {transform_indices = @transform_1, window_bounds = array<i64: 128, 512>}, {transform_indices = @transform_2, window_bounds = array<i64: 16, 1>}, {transform_indices = @transform_3, window_bounds = array<i64: 16, 1>}, {transform_indices = @transform_4, window_bounds = array<i64: 16, 512>}]} {
    %c0_i32 = arith.constant 0 : i32
    %0 = arith.cmpi eq, %arg1, %c0_i32 : i32
    %1 = arith.extui %0 : i1 to i32
    %c0_i32_0 = arith.constant 0 : i32
    %2 = arith.cmpi ne, %1, %c0_i32_0 : i32
    scf.if %2 {
      %cst_10 = arith.constant 0.000000e+00 : f32
      %12 = vector.broadcast %cst_10 : f32 to vector<16x512xf32>
      %c0_11 = arith.constant 0 : index
      %c0_12 = arith.constant 0 : index
      %13 = vector.load %arg7[%c0_11, %c0_12] : memref<16x512xf32, #tpu.memory_space<vmem>>, vector<16x512xf32>
      tpu.vector_store %arg7[%c0_11, %c0_12], %12 {strides = array<i32>} : memref<16x512xf32, #tpu.memory_space<vmem>>, vector<16x512xf32>,
    } else {
    }
    %c0 = arith.constant 0 : index
    %c0_1 = arith.constant 0 : index
    %3 = vector.load %arg7[%c0, %c0_1] : memref<16x512xf32, #tpu.memory_space<vmem>>, vector<16x512xf32>
    %c0_2 = arith.constant 0 : index
    %c0_3 = arith.constant 0 : index
    %4 = vector.load %arg2[%c0_2, %c0_3] : memref<16x128xbf16, #tpu.memory_space<vmem>>, vector<16x128xbf16>
    %c0_4 = arith.constant 0 : index
    %c0_5 = arith.constant 0 : index
    %5 = vector.load %arg3[%c0_4, %c0_5] : memref<128x512xbf16, #tpu.memory_space<vmem>>, vector<128x512xbf16>
    %cst = arith.constant dense<0.000000e+00> : vector<16x512xf32>
    %6 = tpu.matmul %4, %5, %cst {dimension_numbers = #tpu.dot_dimension_numbers<[1], [0], [0], [1], [0, 0, 1, 1], [], []>} : vector<16x128xbf16>, vector<128x512xbf16>, vector<16x512xf32> -> vector<16x512xf32>
    %7 = arith.addf %3, %6 : vector<16x512xf32>
    %c0_6 = arith.constant 0 : index
    %c0_7 = arith.constant 0 : index
    %8 = vector.load %arg7[%c0_6, %c0_7] : memref<16x512xf32, #tpu.memory_space<vmem>>, vector<16x512xf32>
    tpu.vector_store %arg7[%c0_6, %c0_7], %7 {strides = array<i32>} : memref<16x512xf32, #tpu.memory_space<vmem>>, vector<16x512xf32>,
    %c0_i32_8 = arith.constant 0 : i32
    %9 = arith.cmpi eq, %arg1, %c0_i32_8 : i32
    %10 = arith.extui %9 : i1 to i32
    %c0_i32_9 = arith.constant 0 : i32
    %11 = arith.cmpi ne, %10, %c0_i32_9 : i32
    scf.if %11 {
      %c0_10 = arith.constant 0 : index
      %c0_11 = arith.constant 0 : index
      %12 = vector.load %arg7[%c0_10, %c0_11] : memref<16x512xf32, #tpu.memory_space<vmem>>, vector<16x512xf32>
      %c0_12 = arith.constant 0 : index
      %c0_13 = arith.constant 0 : index
      %13 = vector.load %arg4[%c0_12, %c0_13] : memref<16x1xf32, #tpu.memory_space<vmem>>, vector<16x1xf32>
      %c0_14 = arith.constant 0 : index
      %c0_15 = arith.constant 0 : index
      %14 = vector.load %arg5[%c0_14, %c0_15] : memref<16x1xf32, #tpu.memory_space<vmem>>, vector<16x1xf32>
      %cst_16 = arith.constant 0.000000e+00 : f32
      %15 = vector.broadcast %cst_16 : f32 to vector<16x512xf32>
      %16 = arith.maximumf %12, %15 : vector<16x512xf32>
      %cst_17 = arith.constant dense<0.000000e+00> : vector<16xf32>
      %17 = vector.multi_reduction <add>, %16, %cst_17 [1] : vector<16x512xf32> to vector<16xf32>
      %18 = vector.shape_cast %17 : vector<16xf32> to vector<16x1xf32>
      %cst_18 = arith.constant 0.001953125 : f32
      %19 = vector.broadcast %cst_18 : f32 to vector<16x1xf32>
      %20 = arith.mulf %18, %19 : vector<16x1xf32>
      %21 = vector.broadcast %20 : vector<16x1xf32> to vector<16x512xf32>
      %22 = arith.subf %16, %21 : vector<16x512xf32>
      %23 = arith.mulf %22, %22 : vector<16x512xf32>
      %cst_19 = arith.constant dense<0.000000e+00> : vector<16xf32>
      %24 = vector.multi_reduction <add>, %23, %cst_19 [1] : vector<16x512xf32> to vector<16xf32>
      %25 = vector.shape_cast %24 : vector<16xf32> to vector<16x1xf32>
      %cst_20 = arith.constant 0.00195694715 : f32
      %26 = vector.broadcast %cst_20 : f32 to vector<16x1xf32>
      %27 = arith.mulf %25, %26 : vector<16x1xf32>
      %cst_21 = arith.constant 9.99999974E-6 : f32
      %28 = vector.broadcast %cst_21 : f32 to vector<16x1xf32>
      %29 = arith.addf %27, %28 : vector<16x1xf32>
      %30 = math.rsqrt %29 : vector<16x1xf32>
      %31 = vector.broadcast %30 : vector<16x1xf32> to vector<16x512xf32>
      %32 = arith.mulf %22, %31 : vector<16x512xf32>
      %33 = vector.broadcast %13 : vector<16x1xf32> to vector<16x512xf32>
      %34 = arith.mulf %33, %32 : vector<16x512xf32>
      %35 = vector.broadcast %14 : vector<16x1xf32> to vector<16x512xf32>
      %36 = arith.addf %35, %34 : vector<16x512xf32>
      %37 = arith.truncf %36 : vector<16x512xf32> to vector<16x512xbf16>
      %c0_22 = arith.constant 0 : index
      %c0_23 = arith.constant 0 : index
      %38 = vector.load %arg6[%c0_22, %c0_23] : memref<16x512xbf16, #tpu.memory_space<vmem>>, vector<16x512xbf16>
      tpu.vector_store %arg6[%c0_22, %c0_23], %37 {strides = array<i32>} : memref<16x512xbf16, #tpu.memory_space<vmem>>, vector<16x512xbf16>,
    } else {
    }
    return
  }
  func.func @transform_0(%arg0: i32, %arg1: i32) -> (i32, i32) {
    %c0_i32 = arith.constant 0 : i32
    return %arg0, %arg1 : i32, i32
  }
  func.func @transform_1(%arg0: i32, %arg1: i32) -> (i32, i32) {
    %c0_i32 = arith.constant 0 : i32
    %c0_i32_0 = arith.constant 0 : i32
    return %arg1, %c0_i32 : i32, i32
  }
  func.func @transform_2(%arg0: i32, %arg1: i32) -> (i32, i32) {
    %c0_i32 = arith.constant 0 : i32
    %c0_i32_0 = arith.constant 0 : i32
    return %arg0, %c0_i32 : i32, i32
  }
  func.func @transform_3(%arg0: i32, %arg1: i32) -> (i32, i32) {
    %c0_i32 = arith.constant 0 : i32
    %c0_i32_0 = arith.constant 0 : i32
    return %arg0, %c0_i32 : i32, i32
  }
  func.func @transform_4(%arg0: i32, %arg1: i32) -> (i32, i32) {
    %c0_i32 = arith.constant 0 : i32
    %c0_i32_0 = arith.constant 0 : i32
    return %arg0, %c0_i32 : i32, i32
  }
}

module attributes {stable_mosaic.version = 11 : i64} {
  func.func @_conv_relu_bn_skip_kernel(%arg0: i32, %arg1: i32, %arg2: memref<16x128xbf16, #tpu.memory_space<vmem>>, %arg3: memref<128x512xbf16, #tpu.memory_space<vmem>>, %arg4: memref<16x512xbf16, #tpu.memory_space<vmem>>, %arg5: memref<16x1xf32, #tpu.memory_space<vmem>>, %arg6: memref<16x1xf32, #tpu.memory_space<vmem>>, %arg7: memref<16x512xf32, #tpu.memory_space<vmem>>, %arg8: memref<16x512xf32, #tpu.memory_space<vmem>>) attributes {dimension_semantics = [#tpu.dimension_semantics<parallel>, #tpu.dimension_semantics<arbitrary>], iteration_bounds = array<i64: 1, 1>, scalar_prefetch = 0 : i64, scratch_operands = 1 : i64, tpu.core_type = #tpu.core_type<tc>, window_params = [{transform_indices = @transform_0, window_bounds = array<i64: 16, 128>}, {transform_indices = @transform_1, window_bounds = array<i64: 128, 512>}, {transform_indices = @transform_2, window_bounds = array<i64: 16, 512>}, {transform_indices = @transform_3, window_bounds = array<i64: 16, 1>}, {transform_indices = @transform_4, window_bounds = array<i64: 16, 1>}, {transform_indices = @transform_5, window_bounds = array<i64: 16, 512>}]} {
    %c0_i32 = arith.constant 0 : i32
    %0 = arith.cmpi eq, %arg1, %c0_i32 : i32
    %1 = arith.extui %0 : i1 to i32
    %c0_i32_0 = arith.constant 0 : i32
    %2 = arith.cmpi ne, %1, %c0_i32_0 : i32
    scf.if %2 {
      %cst_10 = arith.constant 0.000000e+00 : f32
      %12 = vector.broadcast %cst_10 : f32 to vector<16x512xf32>
      %c0_11 = arith.constant 0 : index
      %c0_12 = arith.constant 0 : index
      %13 = vector.load %arg8[%c0_11, %c0_12] : memref<16x512xf32, #tpu.memory_space<vmem>>, vector<16x512xf32>
      tpu.vector_store %arg8[%c0_11, %c0_12], %12 {strides = array<i32>} : memref<16x512xf32, #tpu.memory_space<vmem>>, vector<16x512xf32>,
    } else {
    }
    %c0 = arith.constant 0 : index
    %c0_1 = arith.constant 0 : index
    %3 = vector.load %arg8[%c0, %c0_1] : memref<16x512xf32, #tpu.memory_space<vmem>>, vector<16x512xf32>
    %c0_2 = arith.constant 0 : index
    %c0_3 = arith.constant 0 : index
    %4 = vector.load %arg2[%c0_2, %c0_3] : memref<16x128xbf16, #tpu.memory_space<vmem>>, vector<16x128xbf16>
    %c0_4 = arith.constant 0 : index
    %c0_5 = arith.constant 0 : index
    %5 = vector.load %arg3[%c0_4, %c0_5] : memref<128x512xbf16, #tpu.memory_space<vmem>>, vector<128x512xbf16>
    %cst = arith.constant dense<0.000000e+00> : vector<16x512xf32>
    %6 = tpu.matmul %4, %5, %cst {dimension_numbers = #tpu.dot_dimension_numbers<[1], [0], [0], [1], [0, 0, 1, 1], [], []>} : vector<16x128xbf16>, vector<128x512xbf16>, vector<16x512xf32> -> vector<16x512xf32>
    %7 = arith.addf %3, %6 : vector<16x512xf32>
    %c0_6 = arith.constant 0 : index
    %c0_7 = arith.constant 0 : index
    %8 = vector.load %arg8[%c0_6, %c0_7] : memref<16x512xf32, #tpu.memory_space<vmem>>, vector<16x512xf32>
    tpu.vector_store %arg8[%c0_6, %c0_7], %7 {strides = array<i32>} : memref<16x512xf32, #tpu.memory_space<vmem>>, vector<16x512xf32>,
    %c0_i32_8 = arith.constant 0 : i32
    %9 = arith.cmpi eq, %arg1, %c0_i32_8 : i32
    %10 = arith.extui %9 : i1 to i32
    %c0_i32_9 = arith.constant 0 : i32
    %11 = arith.cmpi ne, %10, %c0_i32_9 : i32
    scf.if %11 {
      %c0_10 = arith.constant 0 : index
      %c0_11 = arith.constant 0 : index
      %12 = vector.load %arg8[%c0_10, %c0_11] : memref<16x512xf32, #tpu.memory_space<vmem>>, vector<16x512xf32>
      %c0_12 = arith.constant 0 : index
      %c0_13 = arith.constant 0 : index
      %13 = vector.load %arg5[%c0_12, %c0_13] : memref<16x1xf32, #tpu.memory_space<vmem>>, vector<16x1xf32>
      %c0_14 = arith.constant 0 : index
      %c0_15 = arith.constant 0 : index
      %14 = vector.load %arg6[%c0_14, %c0_15] : memref<16x1xf32, #tpu.memory_space<vmem>>, vector<16x1xf32>
      %cst_16 = arith.constant 0.000000e+00 : f32
      %15 = vector.broadcast %cst_16 : f32 to vector<16x512xf32>
      %16 = arith.maximumf %12, %15 : vector<16x512xf32>
      %cst_17 = arith.constant dense<0.000000e+00> : vector<16xf32>
      %17 = vector.multi_reduction <add>, %16, %cst_17 [1] : vector<16x512xf32> to vector<16xf32>
      %18 = vector.shape_cast %17 : vector<16xf32> to vector<16x1xf32>
      %cst_18 = arith.constant 0.001953125 : f32
      %19 = vector.broadcast %cst_18 : f32 to vector<16x1xf32>
      %20 = arith.mulf %18, %19 : vector<16x1xf32>
      %21 = vector.broadcast %20 : vector<16x1xf32> to vector<16x512xf32>
      %22 = arith.subf %16, %21 : vector<16x512xf32>
      %23 = arith.mulf %22, %22 : vector<16x512xf32>
      %cst_19 = arith.constant dense<0.000000e+00> : vector<16xf32>
      %24 = vector.multi_reduction <add>, %23, %cst_19 [1] : vector<16x512xf32> to vector<16xf32>
      %25 = vector.shape_cast %24 : vector<16xf32> to vector<16x1xf32>
      %cst_20 = arith.constant 0.00195694715 : f32
      %26 = vector.broadcast %cst_20 : f32 to vector<16x1xf32>
      %27 = arith.mulf %25, %26 : vector<16x1xf32>
      %cst_21 = arith.constant 9.99999974E-6 : f32
      %28 = vector.broadcast %cst_21 : f32 to vector<16x1xf32>
      %29 = arith.addf %27, %28 : vector<16x1xf32>
      %30 = math.rsqrt %29 : vector<16x1xf32>
      %31 = vector.broadcast %30 : vector<16x1xf32> to vector<16x512xf32>
      %32 = arith.mulf %22, %31 : vector<16x512xf32>
      %33 = vector.broadcast %13 : vector<16x1xf32> to vector<16x512xf32>
      %34 = arith.mulf %33, %32 : vector<16x512xf32>
      %35 = vector.broadcast %14 : vector<16x1xf32> to vector<16x512xf32>
      %36 = arith.addf %35, %34 : vector<16x512xf32>
      %c0_22 = arith.constant 0 : index
      %c0_23 = arith.constant 0 : index
      %37 = vector.load %arg4[%c0_22, %c0_23] : memref<16x512xbf16, #tpu.memory_space<vmem>>, vector<16x512xbf16>
      %38 = arith.extf %37 : vector<16x512xbf16> to vector<16x512xf32>
      %39 = arith.addf %36, %38 : vector<16x512xf32>
      %cst_24 = arith.constant 0.000000e+00 : f32
      %40 = vector.broadcast %cst_24 : f32 to vector<16x512xf32>
      %41 = arith.maximumf %39, %40 : vector<16x512xf32>
      %c0_25 = arith.constant 0 : index
      %c0_26 = arith.constant 0 : index
      %42 = vector.load %arg7[%c0_25, %c0_26] : memref<16x512xf32, #tpu.memory_space<vmem>>, vector<16x512xf32>
      tpu.vector_store %arg7[%c0_25, %c0_26], %41 {strides = array<i32>} : memref<16x512xf32, #tpu.memory_space<vmem>>, vector<16x512xf32>,
    } else {
    }
    return
  }
  func.func @transform_0(%arg0: i32, %arg1: i32) -> (i32, i32) {
    %c0_i32 = arith.constant 0 : i32
    return %arg0, %arg1 : i32, i32
  }
  func.func @transform_1(%arg0: i32, %arg1: i32) -> (i32, i32) {
    %c0_i32 = arith.constant 0 : i32
    %c0_i32_0 = arith.constant 0 : i32
    return %arg1, %c0_i32 : i32, i32
  }
  func.func @transform_2(%arg0: i32, %arg1: i32) -> (i32, i32) {
    %c0_i32 = arith.constant 0 : i32
    %c0_i32_0 = arith.constant 0 : i32
    return %arg0, %c0_i32 : i32, i32
  }
  func.func @transform_3(%arg0: i32, %arg1: i32) -> (i32, i32) {
    %c0_i32 = arith.constant 0 : i32
    %c0_i32_0 = arith.constant 0 : i32
    return %arg0, %c0_i32 : i32, i32
  }
  func.func @transform_4(%arg0: i32, %arg1: i32) -> (i32, i32) {
    %c0_i32 = arith.constant 0 : i32
    %c0_i32_0 = arith.constant 0 : i32
    return %arg0, %c0_i32 : i32, i32
  }
  func.func @transform_5(%arg0: i32, %arg1: i32) -> (i32, i32) {
    %c0_i32 = arith.constant 0 : i32
    %c0_i32_0 = arith.constant 0 : i32
    return %arg0, %c0_i32 : i32, i32
  }
}

</mosaic_0001>

<llo_original>
// kernel: resblock_forward.3
$region0: #{resblock_forward.3}
  #allocation0 [shape = 'u32[]', space=smem, size = 0x4, offset = 0x4, fixed_abs, tag = 'smem constant byte address 0x4 - core index']
  #allocation1 [shape = 'u32[144,128]{1,0:T(1,128)}', space=vmem, size = 0x12000, scoped, tag = 'internal scratch']
  #allocation2 [shape = 'f32[16,512]{1,0:T(8,128)}', space=vmem, size = 0x8000, scoped, tag = 'scratch operand']
  %s0 = inlined_call_operand.vmem [shape: bf16[16,128], index: 0, kind: input, shape index: {}]
  %s1 = inlined_call_operand.vmem [shape: bf16[128,512], index: 1, kind: input, shape index: {}]
  %s2 = inlined_call_operand.vmem [shape: bf16[16,512], index: 2, kind: input, shape index: {}]
  %s3 = inlined_call_operand.vmem [shape: f32[16,1], index: 3, kind: input, shape index: {}]
  %s4 = inlined_call_operand.vmem [shape: f32[16,1], index: 4, kind: input, shape index: {}]
  %s5 = inlined_call_operand.vmem [shape: f32[16,512], index: 5, kind: output, shape index: {}]
  %s6 = sld [smem:[#allocation0]]
  $region38: #{resblock_forward.3} parent=0
    _
  %s8 = ssub.s32 1, %s6
  %s9 = scalar_select 0, %s8, %s6
  // Predicated region
  $region2: #{resblock_forward.3} parent=0 // pred_check
    _
  $region3: #{resblock_forward.3} parent=0 // pred_check_branch
    %11 = sbr.rel (0) target = $region5
  $region4: #{resblock_forward.3} parent=0 // pred_region
    _
  $region5: #{resblock_forward.3} parent=0 // pred_fallthru
    _
  // Predicated region
  $region6: #{resblock_forward.3} parent=0 // pred_check
    _
  $region7: #{resblock_forward.3} parent=0 // pred_check_branch
    %13 = sbr.rel (0) target = $region9
  $region8: #{resblock_forward.3} parent=0 // pred_region
    _
  $region9: #{resblock_forward.3} parent=0 // pred_fallthru
    _
  // Predicated region
  $region10: #{resblock_forward.3} parent=0 // pred_check
    _
  $region11: #{resblock_forward.3} parent=0 // pred_check_branch
    %15 = sbr.rel (0) target = $region13
  $region12: #{resblock_forward.3} parent=0 // pred_region
    _
  $region13: #{resblock_forward.3} parent=0 // pred_fallthru
    _
  // Predicated region
  $region14: #{resblock_forward.3} parent=0 // pred_check
    _
  $region15: #{resblock_forward.3} parent=0 // pred_check_branch
    %17 = sbr.rel (0) target = $region17
  $region16: #{resblock_forward.3} parent=0 // pred_region
    _
  $region17: #{resblock_forward.3} parent=0 // pred_fallthru
    _
  // Predicated region
  $region18: #{resblock_forward.3} parent=0 // pred_check
    _
  $region19: #{resblock_forward.3} parent=0 // pred_check_branch
    %19 = sbr.rel (0) target = $region21
  $region20: #{resblock_forward.3} parent=0 // pred_region
    _
  $region21: #{resblock_forward.3} parent=0 // pred_fallthru
    _
  %p21 = scmp.eq.s32.totalorder 0, 0
  // Predicated region
  $region22: #{resblock_forward.3} parent=0 // pred_check
    %p22 = pneg %p21
  $region23: #{resblock_forward.3} parent=0 // pred_check_branch
    %24 = sbr.rel (%p22) target = $region25
  $region24: #{resblock_forward.3} parent=0 // pred_region
    %25 = vst [vmem:[#allocation2] sm:$0xff] 0.0
    %26 = vst [vmem:[#allocation2 + $0x8] sm:$0xff] 0.0
    %27 = vst [vmem:[#allocation2 + $0x10] sm:$0xff] 0.0
    %28 = vst [vmem:[#allocation2 + $0x18] sm:$0xff] 0.0
    %29 = vst [vmem:[#allocation2 + $0x20] sm:$0xff] 0.0
    %30 = vst [vmem:[#allocation2 + $0x28] sm:$0xff] 0.0
    %31 = vst [vmem:[#allocation2 + $0x30] sm:$0xff] 0.0
    %32 = vst [vmem:[#allocation2 + $0x38] sm:$0xff] 0.0
  $region25: #{resblock_forward.3} parent=0 // pred_fallthru
    _
  %v33 = vld [vmem:[#allocation2] sm:$0xff]
  %v34 = vld [vmem:[#allocation2 + $0x8] sm:$0xff]
  %v35 = vld [vmem:[#allocation2 + $0x10] sm:$0xff]
  %v36 = vld [vmem:[#allocation2 + $0x18] sm:$0xff]
  %v37 = vld [vmem:[#allocation2 + $0x20] sm:$0xff]
  %v38 = vld [vmem:[#allocation2 + $0x28] sm:$0xff]
  %v39 = vld [vmem:[#allocation2 + $0x30] sm:$0xff]
  %v40 = vld [vmem:[#allocation2 + $0x38] sm:$0xff]
  %v41 = vld [vmem:[%s0] sm:$0xf]
  %v42 = vld [vmem:[%s0 + $0x4] sm:$0xf]
  %v43 = vld [vmem:[%s1] sm:$0xff]
  %v44 = vld [vmem:[%s1 + $0x8] sm:$0xff]
  %v45 = vld [vmem:[%s1 + $0x10] sm:$0xff]
  %v46 = vld [vmem:[%s1 + $0x18] sm:$0xff]
  %v47 = vld [vmem:[%s1 + $0x20] sm:$0xff]
  %v48 = vld [vmem:[%s1 + $0x28] sm:$0xff]
  %v49 = vld [vmem:[%s1 + $0x30] sm:$0xff]
  %v50 = vld [vmem:[%s1 + $0x38] sm:$0xff]
  %v51 = vld [vmem:[%s1 + $0x40] sm:$0xff]
  %v52 = vld [vmem:[%s1 + $0x48] sm:$0xff]
  %v53 = vld [vmem:[%s1 + $0x50] sm:$0xff]
  %v54 = vld [vmem:[%s1 + $0x58] sm:$0xff]
  %v55 = vld [vmem:[%s1 + $0x60] sm:$0xff]
  %v56 = vld [vmem:[%s1 + $0x68] sm:$0xff]
  %v57 = vld [vmem:[%s1 + $0x70] sm:$0xff]
  %v58 = vld [vmem:[%s1 + $0x78] sm:$0xff]
  %v59 = vld [vmem:[%s1 + $0x80] sm:$0xff]
  %v60 = vld [vmem:[%s1 + $0x88] sm:$0xff]
  %v61 = vld [vmem:[%s1 + $0x90] sm:$0xff]
  %v62 = vld [vmem:[%s1 + $0x98] sm:$0xff]
  %v63 = vld [vmem:[%s1 + $0xa0] sm:$0xff]
  %v64 = vld [vmem:[%s1 + $0xa8] sm:$0xff]
  %v65 = vld [vmem:[%s1 + $0xb0] sm:$0xff]
  %v66 = vld [vmem:[%s1 + $0xb8] sm:$0xff]
  %v67 = vld [vmem:[%s1 + $0xc0] sm:$0xff]
  %v68 = vld [vmem:[%s1 + $0xc8] sm:$0xff]
  %v69 = vld [vmem:[%s1 + $0xd0] sm:$0xff]
  %v70 = vld [vmem:[%s1 + $0xd8] sm:$0xff]
  %v71 = vld [vmem:[%s1 + $0xe0] sm:$0xff]
  %v72 = vld [vmem:[%s1 + $0xe8] sm:$0xff]
  %v73 = vld [vmem:[%s1 + $0xf0] sm:$0xff]
  %v74 = vld [vmem:[%s1 + $0xf8] sm:$0xff]
  %v77 = vunpack.c.l.b16 %v41
  %v78 = vunpack.c.l.b16 %v42
  %v79 = vpack.c.b16 %v78, %v77
  %v113 = vunpack.c.l.b16 %v43
  %v114 = vunpack.c.h.b16 %v43
  %v115 = vunpack.c.l.b16 %v44
  %v116 = vunpack.c.h.b16 %v44
  %v117 = vunpack.c.l.b16 %v45
  %v118 = vunpack.c.h.b16 %v45
  %v119 = vunpack.c.l.b16 %v46
  %v120 = vunpack.c.h.b16 %v46
  %v121 = vunpack.c.l.b16 %v47
  %v122 = vunpack.c.h.b16 %v47
  %v123 = vunpack.c.l.b16 %v48
  %v124 = vunpack.c.h.b16 %v48
  %v125 = vunpack.c.l.b16 %v49
  %v126 = vunpack.c.h.b16 %v49
  %v127 = vunpack.c.l.b16 %v50
  %v128 = vunpack.c.h.b16 %v50
  %v129 = vunpack.c.l.b16 %v51
  %v130 = vunpack.c.h.b16 %v51
  %v131 = vunpack.c.l.b16 %v52
  %v132 = vunpack.c.h.b16 %v52
  %v133 = vunpack.c.l.b16 %v53
  %v134 = vunpack.c.h.b16 %v53
  %v135 = vunpack.c.l.b16 %v54
  %v136 = vunpack.c.h.b16 %v54
  %v137 = vunpack.c.l.b16 %v55
  %v138 = vunpack.c.h.b16 %v55
  %v139 = vunpack.c.l.b16 %v56
  %v140 = vunpack.c.h.b16 %v56
  %v141 = vunpack.c.l.b16 %v57
  %v142 = vunpack.c.h.b16 %v57
  %v143 = vunpack.c.l.b16 %v58
  %v144 = vunpack.c.h.b16 %v58
  %v145 = vunpack.c.l.b16 %v59
  %v146 = vunpack.c.h.b16 %v59
  %v147 = vunpack.c.l.b16 %v60
  %v148 = vunpack.c.h.b16 %v60
  %v149 = vunpack.c.l.b16 %v61
  %v150 = vunpack.c.h.b16 %v61
  %v151 = vunpack.c.l.b16 %v62
  %v152 = vunpack.c.h.b16 %v62
  %v153 = vunpack.c.l.b16 %v63
  %v154 = vunpack.c.h.b16 %v63
  %v155 = vunpack.c.l.b16 %v64
  %v156 = vunpack.c.h.b16 %v64
  %v157 = vunpack.c.l.b16 %v65
  %v158 = vunpack.c.h.b16 %v65
  %v159 = vunpack.c.l.b16 %v66
  %v160 = vunpack.c.h.b16 %v66
  %v161 = vunpack.c.l.b16 %v67
  %v162 = vunpack.c.h.b16 %v67
  %v163 = vunpack.c.l.b16 %v68
  %v164 = vunpack.c.h.b16 %v68
  %v165 = vunpack.c.l.b16 %v69
  %v166 = vunpack.c.h.b16 %v69
  %v167 = vunpack.c.l.b16 %v70
  %v168 = vunpack.c.h.b16 %v70
  %v169 = vunpack.c.l.b16 %v71
  %v170 = vunpack.c.h.b16 %v71
  %v171 = vunpack.c.l.b16 %v72
  %v172 = vunpack.c.h.b16 %v72
  %v173 = vunpack.c.l.b16 %v73
  %v174 = vunpack.c.h.b16 %v73
  %v175 = vunpack.c.l.b16 %v74
  %v176 = vunpack.c.h.b16 %v74
  %v177 = vpack.c.b16 %v117, %v113
  %v178 = vpack.c.b16 %v118, %v114
  %v179 = vpack.c.b16 %v119, %v115
  %v180 = vpack.c.b16 %v120, %v116
  %v181 = vpack.c.b16 %v125, %v121
  %v182 = vpack.c.b16 %v126, %v122
  %v183 = vpack.c.b16 %v127, %v123
  %v184 = vpack.c.b16 %v128, %v124
  %v185 = vpack.c.b16 %v133, %v129
  %v186 = vpack.c.b16 %v134, %v130
  %v187 = vpack.c.b16 %v135, %v131
  %v188 = vpack.c.b16 %v136, %v132
  %v189 = vpack.c.b16 %v141, %v137
  %v190 = vpack.c.b16 %v142, %v138
  %v191 = vpack.c.b16 %v143, %v139
  %v192 = vpack.c.b16 %v144, %v140
  %v193 = vpack.c.b16 %v149, %v145
  %v194 = vpack.c.b16 %v150, %v146
  %v195 = vpack.c.b16 %v151, %v147
  %v196 = vpack.c.b16 %v152, %v148
  %v197 = vpack.c.b16 %v157, %v153
  %v198 = vpack.c.b16 %v158, %v154
  %v199 = vpack.c.b16 %v159, %v155
  %v200 = vpack.c.b16 %v160, %v156
  %v201 = vpack.c.b16 %v165, %v161
  %v202 = vpack.c.b16 %v166, %v162
  %v203 = vpack.c.b16 %v167, %v163
  %v204 = vpack.c.b16 %v168, %v164
  %v205 = vpack.c.b16 %v173, %v169
  %v206 = vpack.c.b16 %v174, %v170
  %v207 = vpack.c.b16 %v175, %v171
  %v208 = vpack.c.b16 %v176, %v172
  %241 = vmatprep.subr.bf16.mxu0 %v178
  %242 = vmatpush1.bf16.msra.mxu0 %v177
  %243 = vmatprep.subr.bf16.mxu0 %v182
  %244 = vmatpush1.bf16.msra.mxu0 %v181
  %245 = vmatprep.subr.bf16.mxu0 %v186
  %246 = vmatpush1.bf16.msra.mxu0 %v185
  %247 = vmatprep.subr.bf16.mxu0 %v190
  %248 = vmatpush1.bf16.msra.mxu0 %v189
  %249 = vmatprep.subr.bf16.mxu0 %v194
  %250 = vmatpush1.bf16.msra.mxu0 %v193
  %251 = vmatprep.subr.bf16.mxu0 %v198
  %252 = vmatpush1.bf16.msra.mxu0 %v197
  %253 = vmatprep.subr.bf16.mxu0 %v202
  %254 = vmatpush1.bf16.msra.mxu0 %v201
  %255 = vmatprep.subr.bf16.mxu0 %v206
  %256 = vmatpush1.bf16.msra.mxu0 %v205
  %257 = vmatprep.subr.bf16.mxu0 0
  %258 = vmatpush1.bf16.msra.mxu0 0
  %259 = vmatprep.subr.bf16.mxu0 0
  %260 = vmatpush1.bf16.msra.mxu0 0
  %261 = vmatprep.subr.bf16.mxu0 0
  %262 = vmatpush1.bf16.msra.mxu0 0
  %263 = vmatprep.subr.bf16.mxu0 0
  %264 = vmatpush1.bf16.msra.mxu0 0
  %265 = vmatprep.subr.bf16.mxu0 0
  %266 = vmatpush1.bf16.msra.mxu0 0
  %267 = vmatprep.subr.bf16.mxu0 0
  %268 = vmatpush1.bf16.msra.mxu0 0
  %269 = vmatprep.subr.bf16.mxu0 0
  %270 = vmatpush1.bf16.msra.mxu0 0
  %271 = vmatprep.subr.bf16.mxu0 0
  %272 = vmatpush1.bf16.msra.mxu0 0
  %273 = vmatprep.mubr.bf16.mxu0 0
  %274 = vmatmul.mubr.bf16.gmra.mrb[0].mxu0 %v79
  %v275 = vpop.f32.mrb[0].mxu0
  %v276 = vadd.f32 0.0, %v275
  %v277 = vpop.f32.mrb[0].mxu0
  %v278 = vadd.f32 0.0, %v277
  %v279 = vpop.f32.mrb[0].mxu0
  %v280 = vadd.f32 0.0, %v279
  %v281 = vpop.f32.mrb[0].mxu0
  %v282 = vadd.f32 0.0, %v281
  %283 = vdwg.mxu0
  %284 = vmatprep.subr.bf16.mxu0 %v180
  %285 = vmatpush1.bf16.msra.mxu0 %v179
  %286 = vmatprep.subr.bf16.mxu0 %v184
  %287 = vmatpush1.bf16.msra.mxu0 %v183
  %288 = vmatprep.subr.bf16.mxu0 %v188
  %289 = vmatpush1.bf16.msra.mxu0 %v187
  %290 = vmatprep.subr.bf16.mxu0 %v192
  %291 = vmatpush1.bf16.msra.mxu0 %v191
  %292 = vmatprep.subr.bf16.mxu0 %v196
  %293 = vmatpush1.bf16.msra.mxu0 %v195
  %294 = vmatprep.subr.bf16.mxu0 %v200
  %295 = vmatpush1.bf16.msra.mxu0 %v199
  %296 = vmatprep.subr.bf16.mxu0 %v204
  %297 = vmatpush1.bf16.msra.mxu0 %v203
  %298 = vmatprep.subr.bf16.mxu0 %v208
  %299 = vmatpush1.bf16.msra.mxu0 %v207
  %300 = vmatprep.subr.bf16.mxu0 0
  %301 = vmatpush1.bf16.msra.mxu0 0
  %302 = vmatprep.subr.bf16.mxu0 0
  %303 = vmatpush1.bf16.msra.mxu0 0
  %304 = vmatprep.subr.bf16.mxu0 0
  %305 = vmatpush1.bf16.msra.mxu0 0
  %306 = vmatprep.subr.bf16.mxu0 0
  %307 = vmatpush1.bf16.msra.mxu0 0
  %308 = vmatprep.subr.bf16.mxu0 0
  %309 = vmatpush1.bf16.msra.mxu0 0
  %310 = vmatprep.subr.bf16.mxu0 0
  %311 = vmatpush1.bf16.msra.mxu0 0
  %312 = vmatprep.subr.bf16.mxu0 0
  %313 = vmatpush1.bf16.msra.mxu0 0
  %314 = vmatprep.subr.bf16.mxu0 0
  %315 = vmatpush1.bf16.msra.mxu0 0
  %316 = vmatprep.mubr.bf16.mxu0 0
  %317 = vmatmul.mubr.bf16.gmra.mrb[0].mxu0 %v79
  %v318 = vpop.f32.mrb[0].mxu0
  %v319 = vadd.f32 0.0, %v318
  %v320 = vpop.f32.mrb[0].mxu0
  %v321 = vadd.f32 0.0, %v320
  %v322 = vpop.f32.mrb[0].mxu0
  %v323 = vadd.f32 0.0, %v322
  %v324 = vpop.f32.mrb[0].mxu0
  %v325 = vadd.f32 0.0, %v324
  %326 = vdwg.mxu0
  %v327 = vadd.f32 %v33, %v276
  %v328 = vadd.f32 %v34, %v278
  %v329 = vadd.f32 %v35, %v319
  %v330 = vadd.f32 %v36, %v321
  %v331 = vadd.f32 %v37, %v280
  %v332 = vadd.f32 %v38, %v282
  %v333 = vadd.f32 %v39, %v323
  %v334 = vadd.f32 %v40, %v325
  %335 = vst [vmem:[#allocation2] sm:$0xff] %v327
  %336 = vst [vmem:[#allocation2 + $0x8] sm:$0xff] %v328
  %337 = vst [vmem:[#allocation2 + $0x10] sm:$0xff] %v329
  %338 = vst [vmem:[#allocation2 + $0x18] sm:$0xff] %v330
  %339 = vst [vmem:[#allocation2 + $0x20] sm:$0xff] %v331
  %340 = vst [vmem:[#allocation2 + $0x28] sm:$0xff] %v332
  %341 = vst [vmem:[#allocation2 + $0x30] sm:$0xff] %v333
  %342 = vst [vmem:[#allocation2 + $0x38] sm:$0xff] %v334
  // Predicated region
  $region26: #{resblock_forward.3} parent=0 // pred_check
    %p343 = pneg %p21
  $region27: #{resblock_forward.3} parent=0 // pred_check_branch
    %345 = sbr.rel (%p343) target = $region29
  $region28: #{resblock_forward.3} parent=0 // pred_region
    %v346 = vld [vmem:[#allocation2] sm:$0xff]
    %v347 = vld [vmem:[#allocation2 + $0x8] sm:$0xff]
    %v348 = vld [vmem:[#allocation2 + $0x10] sm:$0xff]
    %v349 = vld [vmem:[#allocation2 + $0x18] sm:$0xff]
    %v350 = vld [vmem:[#allocation2 + $0x20] sm:$0xff]
    %v351 = vld [vmem:[#allocation2 + $0x28] sm:$0xff]
    %v352 = vld [vmem:[#allocation2 + $0x30] sm:$0xff]
    %v353 = vld [vmem:[#allocation2 + $0x38] sm:$0xff]
    %v354 = vld [vmem:[%s3] sm:$0xff]
    %v355 = vld [vmem:[%s3 + $0x8] sm:$0xff]
    %v356 = vld [vmem:[%s4] sm:$0xff]
    %v357 = vld [vmem:[%s4 + $0x8] sm:$0xff]
    %v358 = vmax.f32 %v346, 0.0
    %v359 = vmax.f32 %v347, 0.0
    %v360 = vmax.f32 %v348, 0.0
    %v361 = vmax.f32 %v349, 0.0
    %v362 = vmax.f32 %v350, 0.0
    %v363 = vmax.f32 %v351, 0.0
    %v364 = vmax.f32 %v352, 0.0
    %v365 = vmax.f32 %v353, 0.0
    %v366 = vadd.f32 %v358, %v359
    %v367 = vadd.f32 %v366, %v360
    %v368 = vadd.f32 %v367, %v361
    %369 = vadd.xlane.f32.xlu0 %v368
    %v370 = vpop.xlane.xlu0 %369
    %v371 = vadd.f32 %v362, %v363
    %v372 = vadd.f32 %v371, %v364
    %v373 = vadd.f32 %v372, %v365
    %374 = vadd.xlane.f32.xlu0 %v373
    %v375 = vpop.xlane.xlu0 %374
    %v376 = vmul.f32 %v370, 0.001953125
    %v377 = vmul.f32 %v375, 0.001953125
    %v378 = vsub.f32 %v358, %v376
    %v379 = vsub.f32 %v359, %v376
    %v380 = vsub.f32 %v360, %v376
    %v381 = vsub.f32 %v361, %v376
    %v382 = vsub.f32 %v362, %v377
    %v383 = vsub.f32 %v363, %v377
    %v384 = vsub.f32 %v364, %v377
    %v385 = vsub.f32 %v365, %v377
    %v386 = vmul.f32 %v378, %v378
    %v387 = vmul.f32 %v379, %v379
    %v388 = vmul.f32 %v380, %v380
    %v389 = vmul.f32 %v381, %v381
    %v390 = vmul.f32 %v382, %v382
    %v391 = vmul.f32 %v383, %v383
    %v392 = vmul.f32 %v384, %v384
    %v393 = vmul.f32 %v385, %v385
    %v394 = vadd.f32 %v386, %v387
    %v395 = vadd.f32 %v394, %v388
    %v396 = vadd.f32 %v395, %v389
    %397 = vadd.xlane.f32.xlu0 %v396
    %v398 = vpop.xlane.xlu0 %397
    %v399 = vadd.f32 %v390, %v391
    %v400 = vadd.f32 %v399, %v392
    %v401 = vadd.f32 %v400, %v393
    %402 = vadd.xlane.f32.xlu0 %v401
    %v403 = vpop.xlane.xlu0 %402
    %v404 = vmul.f32 %v398, 0.0019569471
    %v405 = vmul.f32 %v403, 0.0019569471
    %v406 = vadd.f32 %v404, 1e-05
    %v407 = vadd.f32 %v405, 1e-05
    %v408 = vrsqrt.pop %v406
    %v409 = vrsqrt.pop %v407
    %v410 = vmul.f32 %v378, %v408
    %v411 = vmul.f32 %v379, %v408
    %v412 = vmul.f32 %v380, %v408
    %v413 = vmul.f32 %v381, %v408
    %v414 = vmul.f32 %v382, %v409
    %v415 = vmul.f32 %v383, %v409
    %v416 = vmul.f32 %v384, %v409
    %v417 = vmul.f32 %v385, %v409
    %419 = vset.pattern.permute.xlu0 0
    %420 = vperm.xlu0 %419, %v354
    %v421 = vpop.permute.xlu0 %420
    %424 = vset.pattern.permute.xlu0 0
    %425 = vperm.xlu0 %424, %v355
    %v426 = vpop.permute.xlu0 %425
    %v428 = vmul.f32 %v421, %v410
    %v429 = vmul.f32 %v421, %v411
    %v430 = vmul.f32 %v421, %v412
    %v431 = vmul.f32 %v421, %v413
    %v432 = vmul.f32 %v426, %v414
    %v433 = vmul.f32 %v426, %v415
    %v434 = vmul.f32 %v426, %v416
    %v435 = vmul.f32 %v426, %v417
    %437 = vset.pattern.permute.xlu0 0
    %438 = vperm.xlu0 %437, %v356
    %v439 = vpop.permute.xlu0 %438
    %442 = vset.pattern.permute.xlu0 0
    %443 = vperm.xlu0 %442, %v357
    %v444 = vpop.permute.xlu0 %443
    %v446 = vadd.f32 %v439, %v428
    %v447 = vadd.f32 %v439, %v429
    %v448 = vadd.f32 %v439, %v430
    %v449 = vadd.f32 %v439, %v431
    %v450 = vadd.f32 %v444, %v432
    %v451 = vadd.f32 %v444, %v433
    %v452 = vadd.f32 %v444, %v434
    %v453 = vadd.f32 %v444, %v435
    %v454 = vld [vmem:[%s2] sm:$0xff]
    %v455 = vld [vmem:[%s2 + $0x8] sm:$0xff]
    %v456 = vld [vmem:[%s2 + $0x10] sm:$0xff]
    %v457 = vld [vmem:[%s2 + $0x18] sm:$0xff]
    %v458 = vunpack.c.l.bf16 %v454
    %v459 = vunpack.c.h.bf16 %v454
    %v460 = vunpack.c.l.bf16 %v455
    %v461 = vunpack.c.h.bf16 %v455
    %v462 = vunpack.c.l.bf16 %v456
    %v463 = vunpack.c.h.bf16 %v456
    %v464 = vunpack.c.l.bf16 %v457
    %v465 = vunpack.c.h.bf16 %v457
    %v466 = vadd.f32 %v446, %v458
    %v467 = vadd.f32 %v447, %v459
    %v468 = vadd.f32 %v448, %v460
    %v469 = vadd.f32 %v449, %v461
    %v470 = vadd.f32 %v450, %v462
    %v471 = vadd.f32 %v451, %v463
    %v472 = vadd.f32 %v452, %v464
    %v473 = vadd.f32 %v453, %v465
    %v474 = vmax.f32 %v466, 0.0
    %v475 = vmax.f32 %v467, 0.0
    %v476 = vmax.f32 %v468, 0.0
    %v477 = vmax.f32 %v469, 0.0
    %v478 = vmax.f32 %v470, 0.0
    %v479 = vmax.f32 %v471, 0.0
    %v480 = vmax.f32 %v472, 0.0
    %v481 = vmax.f32 %v473, 0.0
    %482 = vst [vmem:[%s5] sm:$0xff] %v474
    %483 = vst [vmem:[%s5 + $0x8] sm:$0xff] %v475
    %484 = vst [vmem:[%s5 + $0x10] sm:$0xff] %v476
    %485 = vst [vmem:[%s5 + $0x18] sm:$0xff] %v477
    %486 = vst [vmem:[%s5 + $0x20] sm:$0xff] %v478
    %487 = vst [vmem:[%s5 + $0x28] sm:$0xff] %v479
    %488 = vst [vmem:[%s5 + $0x30] sm:$0xff] %v480
    %489 = vst [vmem:[%s5 + $0x38] sm:$0xff] %v481
  $region29: #{resblock_forward.3} parent=0 // pred_fallthru
    _
  // Predicated region
  $region30: #{resblock_forward.3} parent=0 // pred_check
    _
  $region31: #{resblock_forward.3} parent=0 // pred_check_branch
    %491 = sbr.rel (0) target = $region33
  $region32: #{resblock_forward.3} parent=0 // pred_region
    _
  $region33: #{resblock_forward.3} parent=0 // pred_fallthru
    _
  // Predicated region
  $region34: #{resblock_forward.3} parent=0 // pred_check
    _
  $region35: #{resblock_forward.3} parent=0 // pred_check_branch
    %493 = sbr.rel (0) target = $region37
  $region36: #{resblock_forward.3} parent=0 // pred_region
    _
  $region37: #{resblock_forward.3} parent=0 // pred_fallthru
    _

// kernel: resblock_forward.2
$region0: #{resblock_forward.2}
  #allocation0 [shape = 'u32[]', space=smem, size = 0x4, offset = 0x4, fixed_abs, tag = 'smem constant byte address 0x4 - core index']
  #allocation1 [shape = 'u32[144,128]{1,0:T(1,128)}', space=vmem, size = 0x12000, scoped, tag = 'internal scratch']
  #allocation2 [shape = 'f32[16,512]{1,0:T(8,128)}', space=vmem, size = 0x8000, scoped, tag = 'scratch operand']
  %s0 = inlined_call_operand.vmem [shape: bf16[16,128], index: 0, kind: input, shape index: {}]
  %s1 = inlined_call_operand.vmem [shape: bf16[128,512], index: 1, kind: input, shape index: {}]
  %s2 = inlined_call_operand.vmem [shape: f32[16,1], index: 2, kind: input, shape index: {}]
  %s3 = inlined_call_operand.vmem [shape: f32[16,1], index: 3, kind: input, shape index: {}]
  %s4 = inlined_call_operand.vmem [shape: bf16[16,512], index: 4, kind: output, shape index: {}]
  %s5 = sld [smem:[#allocation0]]
  $region34: #{resblock_forward.2} parent=0
    _
  %s7 = ssub.s32 1, %s5
  %s8 = scalar_select 0, %s7, %s5
  // Predicated region
  $region2: #{resblock_forward.2} parent=0 // pred_check
    _
  $region3: #{resblock_forward.2} parent=0 // pred_check_branch
    %10 = sbr.rel (0) target = $region5
  $region4: #{resblock_forward.2} parent=0 // pred_region
    _
  $region5: #{resblock_forward.2} parent=0 // pred_fallthru
    _
  // Predicated region
  $region6: #{resblock_forward.2} parent=0 // pred_check
    _
  $region7: #{resblock_forward.2} parent=0 // pred_check_branch
    %12 = sbr.rel (0) target = $region9
  $region8: #{resblock_forward.2} parent=0 // pred_region
    _
  $region9: #{resblock_forward.2} parent=0 // pred_fallthru
    _
  // Predicated region
  $region10: #{resblock_forward.2} parent=0 // pred_check
    _
  $region11: #{resblock_forward.2} parent=0 // pred_check_branch
    %14 = sbr.rel (0) target = $region13
  $region12: #{resblock_forward.2} parent=0 // pred_region
    _
  $region13: #{resblock_forward.2} parent=0 // pred_fallthru
    _
  // Predicated region
  $region14: #{resblock_forward.2} parent=0 // pred_check
    _
  $region15: #{resblock_forward.2} parent=0 // pred_check_branch
    %16 = sbr.rel (0) target = $region17
  $region16: #{resblock_forward.2} parent=0 // pred_region
    _
  $region17: #{resblock_forward.2} parent=0 // pred_fallthru
    _
  %p18 = scmp.eq.s32.totalorder 0, 0
  // Predicated region
  $region18: #{resblock_forward.2} parent=0 // pred_check
    %p19 = pneg %p18
  $region19: #{resblock_forward.2} parent=0 // pred_check_branch
    %21 = sbr.rel (%p19) target = $region21
  $region20: #{resblock_forward.2} parent=0 // pred_region
    %22 = vst [vmem:[#allocation2] sm:$0xff] 0.0
    %23 = vst [vmem:[#allocation2 + $0x8] sm:$0xff] 0.0
    %24 = vst [vmem:[#allocation2 + $0x10] sm:$0xff] 0.0
    %25 = vst [vmem:[#allocation2 + $0x18] sm:$0xff] 0.0
    %26 = vst [vmem:[#allocation2 + $0x20] sm:$0xff] 0.0
    %27 = vst [vmem:[#allocation2 + $0x28] sm:$0xff] 0.0
    %28 = vst [vmem:[#allocation2 + $0x30] sm:$0xff] 0.0
    %29 = vst [vmem:[#allocation2 + $0x38] sm:$0xff] 0.0
  $region21: #{resblock_forward.2} parent=0 // pred_fallthru
    _
  %v30 = vld [vmem:[#allocation2] sm:$0xff]
  %v31 = vld [vmem:[#allocation2 + $0x8] sm:$0xff]
  %v32 = vld [vmem:[#allocation2 + $0x10] sm:$0xff]
  %v33 = vld [vmem:[#allocation2 + $0x18] sm:$0xff]
  %v34 = vld [vmem:[#allocation2 + $0x20] sm:$0xff]
  %v35 = vld [vmem:[#allocation2 + $0x28] sm:$0xff]
  %v36 = vld [vmem:[#allocation2 + $0x30] sm:$0xff]
  %v37 = vld [vmem:[#allocation2 + $0x38] sm:$0xff]
  %v38 = vld [vmem:[%s0] sm:$0xf]
  %v39 = vld [vmem:[%s0 + $0x4] sm:$0xf]
  %v40 = vld [vmem:[%s1] sm:$0xff]
  %v41 = vld [vmem:[%s1 + $0x8] sm:$0xff]
  %v42 = vld [vmem:[%s1 + $0x10] sm:$0xff]
  %v43 = vld [vmem:[%s1 + $0x18] sm:$0xff]
  %v44 = vld [vmem:[%s1 + $0x20] sm:$0xff]
  %v45 = vld [vmem:[%s1 + $0x28] sm:$0xff]
  %v46 = vld [vmem:[%s1 + $0x30] sm:$0xff]
  %v47 = vld [vmem:[%s1 + $0x38] sm:$0xff]
  %v48 = vld [vmem:[%s1 + $0x40] sm:$0xff]
  %v49 = vld [vmem:[%s1 + $0x48] sm:$0xff]
  %v50 = vld [vmem:[%s1 + $0x50] sm:$0xff]
  %v51 = vld [vmem:[%s1 + $0x58] sm:$0xff]
  %v52 = vld [vmem:[%s1 + $0x60] sm:$0xff]
  %v53 = vld [vmem:[%s1 + $0x68] sm:$0xff]
  %v54 = vld [vmem:[%s1 + $0x70] sm:$0xff]
  %v55 = vld [vmem:[%s1 + $0x78] sm:$0xff]
  %v56 = vld [vmem:[%s1 + $0x80] sm:$0xff]
  %v57 = vld [vmem:[%s1 + $0x88] sm:$0xff]
  %v58 = vld [vmem:[%s1 + $0x90] sm:$0xff]
  %v59 = vld [vmem:[%s1 + $0x98] sm:$0xff]
  %v60 = vld [vmem:[%s1 + $0xa0] sm:$0xff]
  %v61 = vld [vmem:[%s1 + $0xa8] sm:$0xff]
  %v62 = vld [vmem:[%s1 + $0xb0] sm:$0xff]
  %v63 = vld [vmem:[%s1 + $0xb8] sm:$0xff]
  %v64 = vld [vmem:[%s1 + $0xc0] sm:$0xff]
  %v65 = vld [vmem:[%s1 + $0xc8] sm:$0xff]
  %v66 = vld [vmem:[%s1 + $0xd0] sm:$0xff]
  %v67 = vld [vmem:[%s1 + $0xd8] sm:$0xff]
  %v68 = vld [vmem:[%s1 + $0xe0] sm:$0xff]
  %v69 = vld [vmem:[%s1 + $0xe8] sm:$0xff]
  %v70 = vld [vmem:[%s1 + $0xf0] sm:$0xff]
  %v71 = vld [vmem:[%s1 + $0xf8] sm:$0xff]
  %v74 = vunpack.c.l.b16 %v38
  %v75 = vunpack.c.l.b16 %v39
  %v76 = vpack.c.b16 %v75, %v74
  %v110 = vunpack.c.l.b16 %v40
  %v111 = vunpack.c.h.b16 %v40
  %v112 = vunpack.c.l.b16 %v41
  %v113 = vunpack.c.h.b16 %v41
  %v114 = vunpack.c.l.b16 %v42
  %v115 = vunpack.c.h.b16 %v42
  %v116 = vunpack.c.l.b16 %v43
  %v117 = vunpack.c.h.b16 %v43
  %v118 = vunpack.c.l.b16 %v44
  %v119 = vunpack.c.h.b16 %v44
  %v120 = vunpack.c.l.b16 %v45
  %v121 = vunpack.c.h.b16 %v45
  %v122 = vunpack.c.l.b16 %v46
  %v123 = vunpack.c.h.b16 %v46
  %v124 = vunpack.c.l.b16 %v47
  %v125 = vunpack.c.h.b16 %v47
  %v126 = vunpack.c.l.b16 %v48
  %v127 = vunpack.c.h.b16 %v48
  %v128 = vunpack.c.l.b16 %v49
  %v129 = vunpack.c.h.b16 %v49
  %v130 = vunpack.c.l.b16 %v50
  %v131 = vunpack.c.h.b16 %v50
  %v132 = vunpack.c.l.b16 %v51
  %v133 = vunpack.c.h.b16 %v51
  %v134 = vunpack.c.l.b16 %v52
  %v135 = vunpack.c.h.b16 %v52
  %v136 = vunpack.c.l.b16 %v53
  %v137 = vunpack.c.h.b16 %v53
  %v138 = vunpack.c.l.b16 %v54
  %v139 = vunpack.c.h.b16 %v54
  %v140 = vunpack.c.l.b16 %v55
  %v141 = vunpack.c.h.b16 %v55
  %v142 = vunpack.c.l.b16 %v56
  %v143 = vunpack.c.h.b16 %v56
  %v144 = vunpack.c.l.b16 %v57
  %v145 = vunpack.c.h.b16 %v57
  %v146 = vunpack.c.l.b16 %v58
  %v147 = vunpack.c.h.b16 %v58
  %v148 = vunpack.c.l.b16 %v59
  %v149 = vunpack.c.h.b16 %v59
  %v150 = vunpack.c.l.b16 %v60
  %v151 = vunpack.c.h.b16 %v60
  %v152 = vunpack.c.l.b16 %v61
  %v153 = vunpack.c.h.b16 %v61
  %v154 = vunpack.c.l.b16 %v62
  %v155 = vunpack.c.h.b16 %v62
  %v156 = vunpack.c.l.b16 %v63
  %v157 = vunpack.c.h.b16 %v63
  %v158 = vunpack.c.l.b16 %v64
  %v159 = vunpack.c.h.b16 %v64
  %v160 = vunpack.c.l.b16 %v65
  %v161 = vunpack.c.h.b16 %v65
  %v162 = vunpack.c.l.b16 %v66
  %v163 = vunpack.c.h.b16 %v66
  %v164 = vunpack.c.l.b16 %v67
  %v165 = vunpack.c.h.b16 %v67
  %v166 = vunpack.c.l.b16 %v68
  %v167 = vunpack.c.h.b16 %v68
  %v168 = vunpack.c.l.b16 %v69
  %v169 = vunpack.c.h.b16 %v69
  %v170 = vunpack.c.l.b16 %v70
  %v171 = vunpack.c.h.b16 %v70
  %v172 = vunpack.c.l.b16 %v71
  %v173 = vunpack.c.h.b16 %v71
  %v174 = vpack.c.b16 %v114, %v110
  %v175 = vpack.c.b16 %v115, %v111
  %v176 = vpack.c.b16 %v116, %v112
  %v177 = vpack.c.b16 %v117, %v113
  %v178 = vpack.c.b16 %v122, %v118
  %v179 = vpack.c.b16 %v123, %v119
  %v180 = vpack.c.b16 %v124, %v120
  %v181 = vpack.c.b16 %v125, %v121
  %v182 = vpack.c.b16 %v130, %v126
  %v183 = vpack.c.b16 %v131, %v127
  %v184 = vpack.c.b16 %v132, %v128
  %v185 = vpack.c.b16 %v133, %v129
  %v186 = vpack.c.b16 %v138, %v134
  %v187 = vpack.c.b16 %v139, %v135
  %v188 = vpack.c.b16 %v140, %v136
  %v189 = vpack.c.b16 %v141, %v137
  %v190 = vpack.c.b16 %v146, %v142
  %v191 = vpack.c.b16 %v147, %v143
  %v192 = vpack.c.b16 %v148, %v144
  %v193 = vpack.c.b16 %v149, %v145
  %v194 = vpack.c.b16 %v154, %v150
  %v195 = vpack.c.b16 %v155, %v151
  %v196 = vpack.c.b16 %v156, %v152
  %v197 = vpack.c.b16 %v157, %v153
  %v198 = vpack.c.b16 %v162, %v158
  %v199 = vpack.c.b16 %v163, %v159
  %v200 = vpack.c.b16 %v164, %v160
  %v201 = vpack.c.b16 %v165, %v161
  %v202 = vpack.c.b16 %v170, %v166
  %v203 = vpack.c.b16 %v171, %v167
  %v204 = vpack.c.b16 %v172, %v168
  %v205 = vpack.c.b16 %v173, %v169
  %238 = vmatprep.subr.bf16.mxu0 %v175
  %239 = vmatpush1.bf16.msra.mxu0 %v174
  %240 = vmatprep.subr.bf16.mxu0 %v179
  %241 = vmatpush1.bf16.msra.mxu0 %v178
  %242 = vmatprep.subr.bf16.mxu0 %v183
  %243 = vmatpush1.bf16.msra.mxu0 %v182
  %244 = vmatprep.subr.bf16.mxu0 %v187
  %245 = vmatpush1.bf16.msra.mxu0 %v186
  %246 = vmatprep.subr.bf16.mxu0 %v191
  %247 = vmatpush1.bf16.msra.mxu0 %v190
  %248 = vmatprep.subr.bf16.mxu0 %v195
  %249 = vmatpush1.bf16.msra.mxu0 %v194
  %250 = vmatprep.subr.bf16.mxu0 %v199
  %251 = vmatpush1.bf16.msra.mxu0 %v198
  %252 = vmatprep.subr.bf16.mxu0 %v203
  %253 = vmatpush1.bf16.msra.mxu0 %v202
  %254 = vmatprep.subr.bf16.mxu0 0
  %255 = vmatpush1.bf16.msra.mxu0 0
  %256 = vmatprep.subr.bf16.mxu0 0
  %257 = vmatpush1.bf16.msra.mxu0 0
  %258 = vmatprep.subr.bf16.mxu0 0
  %259 = vmatpush1.bf16.msra.mxu0 0
  %260 = vmatprep.subr.bf16.mxu0 0
  %261 = vmatpush1.bf16.msra.mxu0 0
  %262 = vmatprep.subr.bf16.mxu0 0
  %263 = vmatpush1.bf16.msra.mxu0 0
  %264 = vmatprep.subr.bf16.mxu0 0
  %265 = vmatpush1.bf16.msra.mxu0 0
  %266 = vmatprep.subr.bf16.mxu0 0
  %267 = vmatpush1.bf16.msra.mxu0 0
  %268 = vmatprep.subr.bf16.mxu0 0
  %269 = vmatpush1.bf16.msra.mxu0 0
  %270 = vmatprep.mubr.bf16.mxu0 0
  %271 = vmatmul.mubr.bf16.gmra.mrb[0].mxu0 %v76
  %v272 = vpop.f32.mrb[0].mxu0
  %v273 = vadd.f32 0.0, %v272
  %v274 = vpop.f32.mrb[0].mxu0
  %v275 = vadd.f32 0.0, %v274
  %v276 = vpop.f32.mrb[0].mxu0
  %v277 = vadd.f32 0.0, %v276
  %v278 = vpop.f32.mrb[0].mxu0
  %v279 = vadd.f32 0.0, %v278
  %280 = vdwg.mxu0
  %281 = vmatprep.subr.bf16.mxu0 %v177
  %282 = vmatpush1.bf16.msra.mxu0 %v176
  %283 = vmatprep.subr.bf16.mxu0 %v181
  %284 = vmatpush1.bf16.msra.mxu0 %v180
  %285 = vmatprep.subr.bf16.mxu0 %v185
  %286 = vmatpush1.bf16.msra.mxu0 %v184
  %287 = vmatprep.subr.bf16.mxu0 %v189
  %288 = vmatpush1.bf16.msra.mxu0 %v188
  %289 = vmatprep.subr.bf16.mxu0 %v193
  %290 = vmatpush1.bf16.msra.mxu0 %v192
  %291 = vmatprep.subr.bf16.mxu0 %v197
  %292 = vmatpush1.bf16.msra.mxu0 %v196
  %293 = vmatprep.subr.bf16.mxu0 %v201
  %294 = vmatpush1.bf16.msra.mxu0 %v200
  %295 = vmatprep.subr.bf16.mxu0 %v205
  %296 = vmatpush1.bf16.msra.mxu0 %v204
  %297 = vmatprep.subr.bf16.mxu0 0
  %298 = vmatpush1.bf16.msra.mxu0 0
  %299 = vmatprep.subr.bf16.mxu0 0
  %300 = vmatpush1.bf16.msra.mxu0 0
  %301 = vmatprep.subr.bf16.mxu0 0
  %302 = vmatpush1.bf16.msra.mxu0 0
  %303 = vmatprep.subr.bf16.mxu0 0
  %304 = vmatpush1.bf16.msra.mxu0 0
  %305 = vmatprep.subr.bf16.mxu0 0
  %306 = vmatpush1.bf16.msra.mxu0 0
  %307 = vmatprep.subr.bf16.mxu0 0
  %308 = vmatpush1.bf16.msra.mxu0 0
  %309 = vmatprep.subr.bf16.mxu0 0
  %310 = vmatpush1.bf16.msra.mxu0 0
  %311 = vmatprep.subr.bf16.mxu0 0
  %312 = vmatpush1.bf16.msra.mxu0 0
  %313 = vmatprep.mubr.bf16.mxu0 0
  %314 = vmatmul.mubr.bf16.gmra.mrb[0].mxu0 %v76
  %v315 = vpop.f32.mrb[0].mxu0
  %v316 = vadd.f32 0.0, %v315
  %v317 = vpop.f32.mrb[0].mxu0
  %v318 = vadd.f32 0.0, %v317
  %v319 = vpop.f32.mrb[0].mxu0
  %v320 = vadd.f32 0.0, %v319
  %v321 = vpop.f32.mrb[0].mxu0
  %v322 = vadd.f32 0.0, %v321
  %323 = vdwg.mxu0
  %v324 = vadd.f32 %v30, %v273
  %v325 = vadd.f32 %v31, %v275
  %v326 = vadd.f32 %v32, %v316
  %v327 = vadd.f32 %v33, %v318
  %v328 = vadd.f32 %v34, %v277
  %v329 = vadd.f32 %v35, %v279
  %v330 = vadd.f32 %v36, %v320
  %v331 = vadd.f32 %v37, %v322
  %332 = vst [vmem:[#allocation2] sm:$0xff] %v324
  %333 = vst [vmem:[#allocation2 + $0x8] sm:$0xff] %v325
  %334 = vst [vmem:[#allocation2 + $0x10] sm:$0xff] %v326
  %335 = vst [vmem:[#allocation2 + $0x18] sm:$0xff] %v327
  %336 = vst [vmem:[#allocation2 + $0x20] sm:$0xff] %v328
  %337 = vst [vmem:[#allocation2 + $0x28] sm:$0xff] %v329
  %338 = vst [vmem:[#allocation2 + $0x30] sm:$0xff] %v330
  %339 = vst [vmem:[#allocation2 + $0x38] sm:$0xff] %v331
  // Predicated region
  $region22: #{resblock_forward.2} parent=0 // pred_check
    %p340 = pneg %p18
  $region23: #{resblock_forward.2} parent=0 // pred_check_branch
    %342 = sbr.rel (%p340) target = $region25
  $region24: #{resblock_forward.2} parent=0 // pred_region
    %v343 = vld [vmem:[#allocation2] sm:$0xff]
    %v344 = vld [vmem:[#allocation2 + $0x8] sm:$0xff]
    %v345 = vld [vmem:[#allocation2 + $0x10] sm:$0xff]
    %v346 = vld [vmem:[#allocation2 + $0x18] sm:$0xff]
    %v347 = vld [vmem:[#allocation2 + $0x20] sm:$0xff]
    %v348 = vld [vmem:[#allocation2 + $0x28] sm:$0xff]
    %v349 = vld [vmem:[#allocation2 + $0x30] sm:$0xff]
    %v350 = vld [vmem:[#allocation2 + $0x38] sm:$0xff]
    %v351 = vld [vmem:[%s2] sm:$0xff]
    %v352 = vld [vmem:[%s2 + $0x8] sm:$0xff]
    %v353 = vld [vmem:[%s3] sm:$0xff]
    %v354 = vld [vmem:[%s3 + $0x8] sm:$0xff]
    %v355 = vmax.f32 %v343, 0.0
    %v356 = vmax.f32 %v344, 0.0
    %v357 = vmax.f32 %v345, 0.0
    %v358 = vmax.f32 %v346, 0.0
    %v359 = vmax.f32 %v347, 0.0
    %v360 = vmax.f32 %v348, 0.0
    %v361 = vmax.f32 %v349, 0.0
    %v362 = vmax.f32 %v350, 0.0
    %v363 = vadd.f32 %v355, %v356
    %v364 = vadd.f32 %v363, %v357
    %v365 = vadd.f32 %v364, %v358
    %366 = vadd.xlane.f32.xlu0 %v365
    %v367 = vpop.xlane.xlu0 %366
    %v368 = vadd.f32 %v359, %v360
    %v369 = vadd.f32 %v368, %v361
    %v370 = vadd.f32 %v369, %v362
    %371 = vadd.xlane.f32.xlu0 %v370
    %v372 = vpop.xlane.xlu0 %371
    %v373 = vmul.f32 %v367, 0.001953125
    %v374 = vmul.f32 %v372, 0.001953125
    %v375 = vsub.f32 %v355, %v373
    %v376 = vsub.f32 %v356, %v373
    %v377 = vsub.f32 %v357, %v373
    %v378 = vsub.f32 %v358, %v373
    %v379 = vsub.f32 %v359, %v374
    %v380 = vsub.f32 %v360, %v374
    %v381 = vsub.f32 %v361, %v374
    %v382 = vsub.f32 %v362, %v374
    %v383 = vmul.f32 %v375, %v375
    %v384 = vmul.f32 %v376, %v376
    %v385 = vmul.f32 %v377, %v377
    %v386 = vmul.f32 %v378, %v378
    %v387 = vmul.f32 %v379, %v379
    %v388 = vmul.f32 %v380, %v380
    %v389 = vmul.f32 %v381, %v381
    %v390 = vmul.f32 %v382, %v382
    %v391 = vadd.f32 %v383, %v384
    %v392 = vadd.f32 %v391, %v385
    %v393 = vadd.f32 %v392, %v386
    %394 = vadd.xlane.f32.xlu0 %v393
    %v395 = vpop.xlane.xlu0 %394
    %v396 = vadd.f32 %v387, %v388
    %v397 = vadd.f32 %v396, %v389
    %v398 = vadd.f32 %v397, %v390
    %399 = vadd.xlane.f32.xlu0 %v398
    %v400 = vpop.xlane.xlu0 %399
    %v401 = vmul.f32 %v395, 0.0019569471
    %v402 = vmul.f32 %v400, 0.0019569471
    %v403 = vadd.f32 %v401, 1e-05
    %v404 = vadd.f32 %v402, 1e-05
    %v405 = vrsqrt.pop %v403
    %v406 = vrsqrt.pop %v404
    %v407 = vmul.f32 %v375, %v405
    %v408 = vmul.f32 %v376, %v405
    %v409 = vmul.f32 %v377, %v405
    %v410 = vmul.f32 %v378, %v405
    %v411 = vmul.f32 %v379, %v406
    %v412 = vmul.f32 %v380, %v406
    %v413 = vmul.f32 %v381, %v406
    %v414 = vmul.f32 %v382, %v406
    %416 = vset.pattern.permute.xlu0 0
    %417 = vperm.xlu0 %416, %v351
    %v418 = vpop.permute.xlu0 %417
    %421 = vset.pattern.permute.xlu0 0
    %422 = vperm.xlu0 %421, %v352
    %v423 = vpop.permute.xlu0 %422
    %v425 = vmul.f32 %v418, %v407
    %v426 = vmul.f32 %v418, %v408
    %v427 = vmul.f32 %v418, %v409
    %v428 = vmul.f32 %v418, %v410
    %v429 = vmul.f32 %v423, %v411
    %v430 = vmul.f32 %v423, %v412
    %v431 = vmul.f32 %v423, %v413
    %v432 = vmul.f32 %v423, %v414
    %434 = vset.pattern.permute.xlu0 0
    %435 = vperm.xlu0 %434, %v353
    %v436 = vpop.permute.xlu0 %435
    %439 = vset.pattern.permute.xlu0 0
    %440 = vperm.xlu0 %439, %v354
    %v441 = vpop.permute.xlu0 %440
    %v443 = vadd.f32 %v436, %v425
    %v444 = vadd.f32 %v436, %v426
    %v445 = vadd.f32 %v436, %v427
    %v446 = vadd.f32 %v436, %v428
    %v447 = vadd.f32 %v441, %v429
    %v448 = vadd.f32 %v441, %v430
    %v449 = vadd.f32 %v441, %v431
    %v450 = vadd.f32 %v441, %v432
    %v451 = vpack.c.bf16 %v447, %v443
    %v452 = vpack.c.bf16 %v448, %v444
    %v453 = vpack.c.bf16 %v449, %v445
    %v454 = vpack.c.bf16 %v450, %v446
    %v459 = vunpack.c.l.b16 %v451
    %v460 = vunpack.c.l.b16 %v452
    %v461 = vunpack.c.l.b16 %v453
    %v462 = vunpack.c.l.b16 %v454
    %v463 = vunpack.c.h.b16 %v451
    %v464 = vunpack.c.h.b16 %v452
    %v465 = vunpack.c.h.b16 %v453
    %v466 = vunpack.c.h.b16 %v454
    %v467 = vpack.c.b16 %v460, %v459
    %v468 = vpack.c.b16 %v462, %v461
    %v469 = vpack.c.b16 %v464, %v463
    %v470 = vpack.c.b16 %v466, %v465
    %475 = vst [vmem:[%s4] sm:$0xff] %v467
    %476 = vst [vmem:[%s4 + $0x8] sm:$0xff] %v468
    %477 = vst [vmem:[%s4 + $0x10] sm:$0xff] %v469
    %478 = vst [vmem:[%s4 + $0x18] sm:$0xff] %v470
  $region25: #{resblock_forward.2} parent=0 // pred_fallthru
    _
  // Predicated region
  $region26: #{resblock_forward.2} parent=0 // pred_check
    _
  $region27: #{resblock_forward.2} parent=0 // pred_check_branch
    %480 = sbr.rel (0) target = $region29
  $region28: #{resblock_forward.2} parent=0 // pred_region
    _
  $region29: #{resblock_forward.2} parent=0 // pred_fallthru
    _
  // Predicated region
  $region30: #{resblock_forward.2} parent=0 // pred_check
    _
  $region31: #{resblock_forward.2} parent=0 // pred_check_branch
    %482 = sbr.rel (0) target = $region33
  $region32: #{resblock_forward.2} parent=0 // pred_region
    _
  $region33: #{resblock_forward.2} parent=0 // pred_fallthru
    _

</llo_original>
